<compile_context>
chip_gen: v7x
topology: tpu7x:2x2x1
jax: 0.10.0
libtpu: 0.0.40
codegen_flags: <defaults>
</compile_context>

<pallas_src>
from functools import partial

import jax
import jax.numpy as jnp
from jax.experimental import pallas as pl
from jax.experimental.pallas import tpu as pltpu


def _transition_kernel(x_ref, scale_ref, shift_ref, w_ref, o_ref, *, cin, th, wh):
    # x_ref:     (1, TH, W//2, 2*Cin)  f32, NHWC tile with adjacent-W pairs on lanes
    # scale_ref: (1, 1, 2*Cin)         f32, folded BN scale, tiled [even-w | odd-w]
    # shift_ref: (1, 1, 2*Cin)         f32, folded BN shift, tiled [even-w | odd-w]
    # w_ref:     (Cin, Cout)           bf16, 1x1 conv weight with 1/4 pool divisor folded in
    # o_ref:     (1, (TH//2)*(W//2), Cout)  f32
    x = x_ref[0]                                                   # (TH, Wh, 2*Cin)

    # BatchNorm (eval) + ReLU, elementwise on the VPU (kept f32: v5e has no bf16 VPU).
    z = jnp.maximum(x * scale_ref[...] + shift_ref[...], 0.0)      # (TH, Wh, 2*Cin)

    # 2x2 sum-pool of the ReLU'd activations (pool commutes with the 1x1 conv).
    #  W-pool: even/odd W live in the two lane halves -> one lane-half add.
    zw = z[:, :, :cin] + z[:, :, cin:]                             # (TH, Wh, Cin)
    #  H-pool: fold row pairs onto the sublane dim (lane width untouched).
    zr = zw.reshape(th // 2, 2 * wh, cin)                          # rows (2i, 2i+1) stacked
    zp = zr[:, :wh, :] + zr[:, wh:, :]                             # (TH//2, Wh, Cin)

    # 1x1 conv == channel matmul on the MXU: bf16 inputs, f32 accumulation.
    pooled = zp.reshape((th // 2) * wh, cin).astype(jnp.bfloat16)  # (M, Cin)
    o_ref[0] = jnp.dot(pooled, w_ref[...], preferred_element_type=jnp.float32)


def _pick_tile_h(H, W, Cin, max_bytes=2 * 1024 * 1024):
    """Largest even row-tile TH dividing H whose f32 input tile fits the budget."""
    if H * W * Cin * 4 <= max_bytes:
        return H                                    # whole image per step (block == array)
    for th in range(H - 2, 0, -2):
        if H % th != 0:
            continue
        if ((th // 2) * (W // 2)) % 8 != 0:         # output block sublane-dim constraint
            continue
        if th * W * Cin * 4 <= max_bytes:
            return th
    return H  # fallback: whole image (may be VMEM-heavy for extreme shapes)


def transition_forward(x_nchw, gamma, beta, running_mean, running_var, conv_w,
                       eps=1e-5):
    """Pallas implementation of Transition.forward.  x_nchw: (N, Cin, H, W)."""
    N, Cin, H, W = x_nchw.shape
    Cout = conv_w.shape[0]
    assert H % 2 == 0 and W % 2 == 0
    Wh = W // 2

    # ---- glue: layout + parameter folding (plain JAX) ----
    # One NCHW->NHWC transpose is required to put channels on the lane dim; the
    # follow-up reshape to (N, H, W//2, 2*Cin) is a free row-major reinterpretation.
    x = jnp.transpose(x_nchw, (0, 2, 3, 1)).astype(jnp.float32).reshape(N, H, Wh, 2 * Cin)

    inv_std = gamma / jnp.sqrt(running_var + eps)
    scale = inv_std.astype(jnp.float32)
    shift = (beta - running_mean * inv_std).astype(jnp.float32)
    scale2 = jnp.tile(scale, 2).reshape(1, 1, 2 * Cin)   # [even-w chans | odd-w chans]
    shift2 = jnp.tile(shift, 2).reshape(1, 1, 2 * Cin)

    # 1x1 conv weight (Cin, Cout); fold the 2x2 avg-pool divisor (1/4) in; bf16 for the MXU.
    w = (conv_w.reshape(Cout, Cin).T.astype(jnp.float32) * 0.25).astype(jnp.bfloat16)

    TH = _pick_tile_h(H, W, Cin)
    n_ht = H // TH
    # NOTE: for tiny N * n_ht the ~0.35us/step grid overhead dominates; real
    # DenseNet shapes give plenty of parallel steps for both v7x TensorCores.

    out = pl.pallas_call(
        partial(_transition_kernel, cin=Cin, th=TH, wh=Wh),
        out_shape=jax.ShapeDtypeStruct((N, (H // 2) * Wh, Cout), jnp.float32),
        grid_spec=pltpu.PrefetchScalarGridSpec(
            num_scalar_prefetch=0,
            grid=(N, n_ht),
            in_specs=[
                pl.BlockSpec((1, TH, Wh, 2 * Cin), lambda n, t: (n, t, 0, 0)),
                pl.BlockSpec((1, 1, 2 * Cin), lambda n, t: (0, 0, 0)),
                pl.BlockSpec((1, 1, 2 * Cin), lambda n, t: (0, 0, 0)),
                pl.BlockSpec((Cin, Cout), lambda n, t: (0, 0)),
            ],
            out_specs=pl.BlockSpec((1, (TH // 2) * Wh, Cout), lambda n, t: (n, t, 0)),
        ),
        compiler_params=pltpu.CompilerParams(
            dimension_semantics=("parallel", "parallel"),
            vmem_limit_bytes=32 * 1024 * 1024,   # explicit, with headroom for v7x's 64 MiB
        ),
    )(x, scale2, shift2, w)

    # back to NCHW to match PyTorch output: (N, Cout, H//2, W//2)
    out = out.reshape(N, H // 2, Wh, Cout)
    return jnp.transpose(out, (0, 3, 1, 2))


def transition_reference(x_nchw, gamma, beta, running_mean, running_var, conv_w,
                         eps=1e-5):
    """Pure-JAX f32 reference with identical semantics (eval-mode BN)."""
    inv_std = gamma / jnp.sqrt(running_var + eps)
    xn = (x_nchw - running_mean[None, :, None, None]) * inv_std[None, :, None, None] \
         + beta[None, :, None, None]
    z = jnp.maximum(xn, 0.0)                                        # (N, Cin, H, W)
    y = jnp.einsum("nchw,oc->nohw", z, conv_w.reshape(conv_w.shape[0], -1))
    N, Co, H, W = y.shape
    y = y.reshape(N, Co, H // 2, 2, W // 2, 2).mean(axis=(3, 5))
    return y


if __name__ == "__main__":
    N, Cin, Cout, H, W = 2, 4, 8, 16, 16

    key = jax.random.PRNGKey(0)
    k_x, k_g, k_b, k_m, k_v, k_w = jax.random.split(key, 6)

    x = jax.random.normal(k_x, (N, Cin, H, W), dtype=jnp.float32)
    gamma = jax.random.normal(k_g, (Cin,), dtype=jnp.float32) * 0.1 + 1.0
    beta = jax.random.normal(k_b, (Cin,), dtype=jnp.float32) * 0.1
    running_mean = jax.random.normal(k_m, (Cin,), dtype=jnp.float32) * 0.1
    running_var = jnp.abs(jax.random.normal(k_v, (Cin,), dtype=jnp.float32)) + 0.5
    conv_w = jax.random.normal(k_w, (Cout, Cin, 1, 1), dtype=jnp.float32) * 0.1

    out = transition_forward(x, gamma, beta, running_mean, running_var, conv_w)
    out = jax.block_until_ready(out)

    ref = transition_reference(x, gamma, beta, running_mean, running_var, conv_w)
    assert out.shape == (N, Cout, H // 2, W // 2), out.shape
    # bf16 MXU inputs (f32 accumulation) -> loosen tolerance vs the f32 reference.
    max_err = float(jnp.max(jnp.abs(out - ref)))
    assert jnp.allclose(out, ref, atol=2e-2, rtol=2e-2), max_err

    print("KERNEL_OK")
</pallas_src>

<mosaic_0001>
module attributes {stable_mosaic.version = 11 : i64} {
  func.func @_transition_kernel(%arg0: i32, %arg1: i32, %arg2: memref<1x16x8x8xf32, #tpu.memory_space<vmem>>, %arg3: memref<1x1x8xf32, #tpu.memory_space<vmem>>, %arg4: memref<1x1x8xf32, #tpu.memory_space<vmem>>, %arg5: memref<4x8xbf16, #tpu.memory_space<vmem>>, %arg6: memref<1x64x8xf32, #tpu.memory_space<vmem>>) attributes {dimension_semantics = [#tpu.dimension_semantics<parallel>, #tpu.dimension_semantics<parallel>], iteration_bounds = array<i64: 2, 1>, scalar_prefetch = 0 : i64, scratch_operands = 0 : i64, tpu.core_type = #tpu.core_type<tc>, window_params = [{transform_indices = @transform_0, window_bounds = array<i64: 1, 16, 8, 8>}, {pipeline_mode = #tpu.pipeline_mode<synchronous>, transform_indices = @transform_1, window_bounds = array<i64: 1, 1, 8>}, {pipeline_mode = #tpu.pipeline_mode<synchronous>, transform_indices = @transform_2, window_bounds = array<i64: 1, 1, 8>}, {pipeline_mode = #tpu.pipeline_mode<synchronous>, transform_indices = @transform_3, window_bounds = array<i64: 4, 8>}, {transform_indices = @transform_4, window_bounds = array<i64: 1, 64, 8>}]} {
    %c0 = arith.constant 0 : index
    %c0_0 = arith.constant 0 : index
    %c0_1 = arith.constant 0 : index
    %c0_2 = arith.constant 0 : index
    %0 = vector.load %arg2[%c0, %c0_0, %c0_1, %c0_2] : memref<1x16x8x8xf32, #tpu.memory_space<vmem>>, vector<1x16x8x8xf32>
    %1 = vector.shape_cast %0 : vector<1x16x8x8xf32> to vector<16x8x8xf32>
    %c0_3 = arith.constant 0 : index
    %c0_4 = arith.constant 0 : index
    %c0_5 = arith.constant 0 : index
    %2 = vector.load %arg3[%c0_3, %c0_4, %c0_5] : memref<1x1x8xf32, #tpu.memory_space<vmem>>, vector<1x1x8xf32>
    %3 = vector.broadcast %2 : vector<1x1x8xf32> to vector<16x8x8xf32>
    %4 = arith.mulf %1, %3 : vector<16x8x8xf32>
    %c0_6 = arith.constant 0 : index
    %c0_7 = arith.constant 0 : index
    %c0_8 = arith.constant 0 : index
    %5 = vector.load %arg4[%c0_6, %c0_7, %c0_8] : memref<1x1x8xf32, #tpu.memory_space<vmem>>, vector<1x1x8xf32>
    %6 = vector.broadcast %5 : vector<1x1x8xf32> to vector<16x8x8xf32>
    %7 = arith.addf %4, %6 : vector<16x8x8xf32>
    %cst = arith.constant 0.000000e+00 : f32
    %8 = vector.broadcast %cst : f32 to vector<16x8x8xf32>
    %9 = arith.maximumf %7, %8 : vector<16x8x8xf32>
    %10 = vector.extract_strided_slice %9 {offsets = [0, 0, 0], sizes = [16, 8, 4], strides = [1, 1, 1]} : vector<16x8x8xf32> to vector<16x8x4xf32>
    %11 = vector.extract_strided_slice %9 {offsets = [0, 0, 4], sizes = [16, 8, 4], strides = [1, 1, 1]} : vector<16x8x8xf32> to vector<16x8x4xf32>
    %12 = arith.addf %10, %11 : vector<16x8x4xf32>
    %13 = vector.shape_cast %12 : vector<16x8x4xf32> to vector<8x16x4xf32>
    %14 = vector.extract_strided_slice %13 {offsets = [0, 0, 0], sizes = [8, 8, 4], strides = [1, 1, 1]} : vector<8x16x4xf32> to vector<8x8x4xf32>
    %15 = vector.extract_strided_slice %13 {offsets = [0, 8, 0], sizes = [8, 8, 4], strides = [1, 1, 1]} : vector<8x16x4xf32> to vector<8x8x4xf32>
    %16 = arith.addf %14, %15 : vector<8x8x4xf32>
    %17 = vector.shape_cast %16 : vector<8x8x4xf32> to vector<64x4xf32>
    %18 = arith.truncf %17 : vector<64x4xf32> to vector<64x4xbf16>
    %c0_9 = arith.constant 0 : index
    %c0_10 = arith.constant 0 : index
    %19 = vector.load %arg5[%c0_9, %c0_10] : memref<4x8xbf16, #tpu.memory_space<vmem>>, vector<4x8xbf16>
    %cst_11 = arith.constant dense<0.000000e+00> : vector<64x8xf32>
    %20 = tpu.matmul %18, %19, %cst_11 {dimension_numbers = #tpu.dot_dimension_numbers<[1], [0], [0], [1], [0, 0, 1, 1], [], []>} : vector<64x4xbf16>, vector<4x8xbf16>, vector<64x8xf32> -> vector<64x8xf32>
    %c0_12 = arith.constant 0 : index
    %c0_13 = arith.constant 0 : index
    %c0_14 = arith.constant 0 : index
    %21 = vector.load %arg6[%c0_12, %c0_13, %c0_14] : memref<1x64x8xf32, #tpu.memory_space<vmem>>, vector<1x64x8xf32>
    %22 = vector.shape_cast %21 : vector<1x64x8xf32> to vector<64x8xf32>
    %23 = vector.shape_cast %20 : vector<64x8xf32> to vector<1x64x8xf32>
    tpu.vector_store %arg6[%c0_12, %c0_13, %c0_14], %23 {strides = array<i32>} : memref<1x64x8xf32, #tpu.memory_space<vmem>>, vector<1x64x8xf32>,
    return
  }
  func.func @transform_0(%arg0: i32, %arg1: i32) -> (i32, i32, i32, i32) {
    %c0_i32 = arith.constant 0 : i32
    %c0_i32_0 = arith.constant 0 : i32
    %c0_i32_1 = arith.constant 0 : i32
    return %arg0, %arg1, %c0_i32, %c0_i32_0 : i32, i32, i32, i32
  }
  func.func @transform_1(%arg0: i32, %arg1: i32) -> (i32, i32, i32) {
    %c0_i32 = arith.constant 0 : i32
    %c0_i32_0 = arith.constant 0 : i32
    %c0_i32_1 = arith.constant 0 : i32
    %c0_i32_2 = arith.constant 0 : i32
    return %c0_i32, %c0_i32_0, %c0_i32_1 : i32, i32, i32
  }
  func.func @transform_2(%arg0: i32, %arg1: i32) -> (i32, i32, i32) {
    %c0_i32 = arith.constant 0 : i32
    %c0_i32_0 = arith.constant 0 : i32
    %c0_i32_1 = arith.constant 0 : i32
    %c0_i32_2 = arith.constant 0 : i32
    return %c0_i32, %c0_i32_0, %c0_i32_1 : i32, i32, i32
  }
  func.func @transform_3(%arg0: i32, %arg1: i32) -> (i32, i32) {
    %c0_i32 = arith.constant 0 : i32
    %c0_i32_0 = arith.constant 0 : i32
    %c0_i32_1 = arith.constant 0 : i32
    return %c0_i32, %c0_i32_0 : i32, i32
  }
  func.func @transform_4(%arg0: i32, %arg1: i32) -> (i32, i32, i32) {
    %c0_i32 = arith.constant 0 : i32
    %c0_i32_0 = arith.constant 0 : i32
    return %arg0, %arg1, %c0_i32 : i32, i32, i32
  }
}

</mosaic_0001>

<llo_original>
// kernel: tpu_custom_call.1
$region0: #{tpu_custom_call.1}
  #allocation0 [shape = 'u32[]', space=smem, size = 0x4, offset = 0x4, fixed_abs, tag = 'smem constant byte address 0x4 - core index']
  #allocation1 [shape = 'u32[144,128]{1,0:T(1,128)}', space=vmem, size = 0x12000, scoped, tag = 'internal scratch']
  %s0 = inlined_call_operand.vmem [shape: f32[2,16,8,8], index: 0, kind: input, shape index: {}]
  %s1 = inlined_call_operand.vmem [shape: f32[1,1,8], index: 1, kind: input, shape index: {}]
  %s2 = inlined_call_operand.vmem [shape: f32[1,1,8], index: 2, kind: input, shape index: {}]
  %s3 = inlined_call_operand.vmem [shape: bf16[4,8], index: 3, kind: input, shape index: {}]
  %s4 = inlined_call_operand.vmem [shape: f32[2,64,8], index: 4, kind: output, shape index: {}]
  %s5 = sld [smem:[#allocation0]]
  $region49: #{tpu_custom_call.1} parent=0
    _
  %s7 = ssub.s32 1, %s5
  %s8 = scalar_select 0, %s7, %s5
  loop: start=0, step=1, limit=4
  $region2: #{tpu_custom_call.1} parent=0 // loop_pre_header
    _
  $region3: #{tpu_custom_call.1} parent=0 // loop_header
    %s10 = sphi 0, %s14
    %p11 = scmp.ge.s32.totalorder %s10, 4
    %s17 = sphi 0, %s29
    %s18 = sphi 0, %s25
    %s19 = sphi 0, %s17
    %s20 = sphi 0, %s18
    %s21 = sphi 0, %s19
    %s22 = sphi 0, %s20
    %s34 = sphi 0, %s36
    %s37 = sphi 0, %s34
    %s38 = sphi 0, %s37
    %s54 = sphi 0, %s38
    %s58 = sphi 0, %s58
    %s60 = sphi 0, %s58
    %s61 = sphi 0, %s60
    %s75 = sphi 0, %s61
    %s79 = sphi 0, %s79
    %s81 = sphi 0, %s79
    %s82 = sphi 0, %s81
    %s96 = sphi 0, %s82
    %s100 = sphi 0, %s100
    %s102 = sphi 0, %s100
    %s103 = sphi 0, %s102
    %s117 = sphi 0, %s103
    %s125 = sphi 0, %s127
    %s128 = sphi 0, %s125
    %s129 = sphi 0, %s128
    %s145 = sphi 0, %s129
  $region4: #{tpu_custom_call.1} parent=0 // loop_header_branch
    %13 = sbr.rel (%p11) target = $region8
  $region5: #{tpu_custom_call.1} parent=0 // loop_body
    %s15 = ssub.s32 %s10, 1
    %s16 = ssub.s32 %s10, 2
    %s23 = sadd.s32 1, %s18
    %p24 = scmp.ge.s32.totalorder %s23, 1
    %s25 = scalar_select %p24, 0, %s23
    %s26 = sadd.s32 1, %s17
    %s27 = scalar_select %p24, %s26, %s17
    %p28 = scmp.ge.s32.totalorder %s27, 2
    %s29 = scalar_select %p28, 0, %s27
    %s30 = ssub.s32 %s17, %s29
    %s31 = ssub.s32 %s18, %s25
    %s32 = sor.u32 %s30, %s31
    %p33 = scmp.eq.s32.totalorder %s32, 0
    %s35 = sadd.s32 %s34, 1
    %s36 = scalar_select %p33, %s34, %s35
    %p39 = pneg %p33
    %p40 = scmp.eq.s32.totalorder %s10, 1
    %p41 = por %p39, %p40
    %p42 = scmp.ne.s32.totalorder %s34, %s37
    %p43 = scmp.eq.s32.totalorder %s10, 0
    %p44 = por %p42, %p43
    %p45 = scmp.ne.s32.totalorder %s34, %s37
    %p46 = scmp.eq.s32.totalorder %s15, 1
    %p47 = por %p45, %p46
    %p48 = scmp.ne.s32.totalorder %s37, %s38
    %p49 = scmp.eq.s32.totalorder %s15, 0
    %p50 = por %p48, %p49
    %p51 = scmp.ne.s32.totalorder %s37, %s38
    %p52 = scmp.eq.s32.totalorder %s16, 1
    %p53 = por %p51, %p52
    %p55 = scmp.ne.s32.totalorder %s38, %s54
    %p56 = scmp.eq.s32.totalorder %s16, 0
    %p57 = por %p55, %p56
    %s59 = sadd.s32 %s58, 1
    %p62 = scmp.eq.s32.totalorder %s10, 1
    %p63 = scmp.ne.s32.totalorder %s58, %s60
    %p64 = scmp.eq.s32.totalorder %s10, 0
    %p65 = por %p63, %p64
    %p66 = scmp.ne.s32.totalorder %s58, %s60
    %p67 = scmp.eq.s32.totalorder %s15, 1
    %p68 = por %p66, %p67
    %p69 = scmp.ne.s32.totalorder %s60, %s61
    %p70 = scmp.eq.s32.totalorder %s15, 0
    %p71 = por %p69, %p70
    %p72 = scmp.ne.s32.totalorder %s60, %s61
    %p73 = scmp.eq.s32.totalorder %s16, 1
    %p74 = por %p72, %p73
    %p76 = scmp.ne.s32.totalorder %s61, %s75
    %p77 = scmp.eq.s32.totalorder %s16, 0
    %p78 = por %p76, %p77
    %s80 = sadd.s32 %s79, 1
    %p83 = scmp.eq.s32.totalorder %s10, 1
    %p84 = scmp.ne.s32.totalorder %s79, %s81
    %p85 = scmp.eq.s32.totalorder %s10, 0
    %p86 = por %p84, %p85
    %p87 = scmp.ne.s32.totalorder %s79, %s81
    %p88 = scmp.eq.s32.totalorder %s15, 1
    %p89 = por %p87, %p88
    %p90 = scmp.ne.s32.totalorder %s81, %s82
    %p91 = scmp.eq.s32.totalorder %s15, 0
    %p92 = por %p90, %p91
    %p93 = scmp.ne.s32.totalorder %s81, %s82
    %p94 = scmp.eq.s32.totalorder %s16, 1
    %p95 = por %p93, %p94
    %p97 = scmp.ne.s32.totalorder %s82, %s96
    %p98 = scmp.eq.s32.totalorder %s16, 0
    %p99 = por %p97, %p98
    %s101 = sadd.s32 %s100, 1
    %p104 = scmp.eq.s32.totalorder %s10, 1
    %p105 = scmp.ne.s32.totalorder %s100, %s102
    %p106 = scmp.eq.s32.totalorder %s10, 0
    %p107 = por %p105, %p106
    %p108 = scmp.ne.s32.totalorder %s100, %s102
    %p109 = scmp.eq.s32.totalorder %s15, 1
    %p110 = por %p108, %p109
    %p111 = scmp.ne.s32.totalorder %s102, %s103
    %p112 = scmp.eq.s32.totalorder %s15, 0
    %p113 = por %p111, %p112
    %p114 = scmp.ne.s32.totalorder %s102, %s103
    %p115 = scmp.eq.s32.totalorder %s16, 1
    %p116 = por %p114, %p115
    %p118 = scmp.ne.s32.totalorder %s103, %s117
    %p119 = scmp.eq.s32.totalorder %s16, 0
    %p120 = por %p118, %p119
    %s121 = ssub.s32 %s17, %s29
    %s122 = ssub.s32 %s18, %s25
    %s123 = sor.u32 %s121, %s122
    %p124 = scmp.eq.s32.totalorder %s123, 0
    %s126 = sadd.s32 %s125, 1
    %s127 = scalar_select %p124, %s125, %s126
    %p130 = pneg %p124
    %p131 = scmp.eq.s32.totalorder %s10, 1
    %p132 = por %p130, %p131
    %p133 = scmp.ne.s32.totalorder %s125, %s128
    %p134 = scmp.eq.s32.totalorder %s10, 0
    %p135 = por %p133, %p134
    %p136 = scmp.ne.s32.totalorder %s125, %s128
    %p137 = scmp.eq.s32.totalorder %s15, 1
    %p138 = por %p136, %p137
    %p139 = scmp.ne.s32.totalorder %s128, %s129
    %p140 = scmp.eq.s32.totalorder %s15, 0
    %p141 = por %p139, %p140
    %p142 = scmp.ne.s32.totalorder %s128, %s129
    %p143 = scmp.eq.s32.totalorder %s16, 1
    %p144 = por %p142, %p143
    %p146 = scmp.ne.s32.totalorder %s129, %s145
    %p147 = scmp.eq.s32.totalorder %s16, 0
    %p148 = por %p146, %p147
    %p149 = scmp.le.s32.totalorder 1, %s10
    %p150 = scmp.lt.s32.totalorder %s10, 3
    %p151 = pnand %p149, %p150
    %p152 = pneg %p151
    // Predicated region
    $region9: #{tpu_custom_call.1} parent=5 // pred_check
      _
    $region10: #{tpu_custom_call.1} parent=5 // pred_check_branch
      %154 = sbr.rel (%p151) target = $region12
    $region11: #{tpu_custom_call.1} parent=5 // pred_region
      %s155 = ssub.s32 %s10, 1
      // Predicated region
      $region13: #{tpu_custom_call.1} parent=11 // pred_check
        %p156 = pneg %p71
      $region14: #{tpu_custom_call.1} parent=11 // pred_check_branch
        %158 = sbr.rel (%p156) target = $region16
      $region15: #{tpu_custom_call.1} parent=11 // pred_region
        _
      $region16: #{tpu_custom_call.1} parent=11 // pred_fallthru
        _
      // Predicated region
      $region17: #{tpu_custom_call.1} parent=11 // pred_check
        %p159 = pneg %p92
      $region18: #{tpu_custom_call.1} parent=11 // pred_check_branch
        %161 = sbr.rel (%p159) target = $region20
      $region19: #{tpu_custom_call.1} parent=11 // pred_region
        _
      $region20: #{tpu_custom_call.1} parent=11 // pred_fallthru
        _
      // Predicated region
      $region21: #{tpu_custom_call.1} parent=11 // pred_check
        %p162 = pneg %p113
      $region22: #{tpu_custom_call.1} parent=11 // pred_check_branch
        %164 = sbr.rel (%p162) target = $region24
      $region23: #{tpu_custom_call.1} parent=11 // pred_region
        _
      $region24: #{tpu_custom_call.1} parent=11 // pred_fallthru
        _
    $region12: #{tpu_custom_call.1} parent=5 // pred_fallthru
      _
    %p165 = scmp.lt.s32.totalorder %s10, 2
    // Predicated region
    $region25: #{tpu_custom_call.1} parent=5 // pred_check
      %p166 = pneg %p165
    $region26: #{tpu_custom_call.1} parent=5 // pred_check_branch
      %168 = sbr.rel (%p166) target = $region28
    $region27: #{tpu_custom_call.1} parent=5 // pred_region
      // Predicated region
      $region29: #{tpu_custom_call.1} parent=27 // pred_check
        %p169 = pneg %p44
      $region30: #{tpu_custom_call.1} parent=27 // pred_check_branch
        %171 = sbr.rel (%p169) target = $region32
      $region31: #{tpu_custom_call.1} parent=27 // pred_region
        %s172 = smul.u32 16, %s18
        %p173 = scmp.lt.s32.totalorder %s17, 1
        %s174 = scalar_select %p173, %s17, 1
        %p175 = scmp.lt.s32.totalorder %s172, 15
        %s176 = scalar_select %p175, %s172, 15
        %s177 = smul.addr %s174, 16
        %s178 = sadd.s32 %s176, %s177
        %s179 = smul.addr %s178, 8
        %s180 = scalar_lea.vmem %s0, %s179
        %s181 = smul.u32 16, %s18
      $region32: #{tpu_custom_call.1} parent=27 // pred_fallthru
        _
    $region28: #{tpu_custom_call.1} parent=5 // pred_fallthru
      _
    %p182 = scmp.le.s32.totalorder 1, %s10
    %p183 = scmp.lt.s32.totalorder %s10, 3
    %p184 = pnand %p182, %p183
    %p185 = pneg %p184
    // Predicated region
    $region33: #{tpu_custom_call.1} parent=5 // pred_check
      _
    $region34: #{tpu_custom_call.1} parent=5 // pred_check_branch
      %187 = sbr.rel (%p184) target = $region36
    $region35: #{tpu_custom_call.1} parent=5 // pred_region
      %s188 = ssub.s32 %s10, 1
      %s189 = smul.u32 16, %s20
      %p190 = scmp.lt.s32.totalorder %s19, 1
      %s191 = scalar_select %p190, %s19, 1
      %p192 = scmp.lt.s32.totalorder %s189, 15
      %s193 = scalar_select %p192, %s189, 15
      %s194 = smul.addr %s191, 16
      %s195 = sadd.s32 %s193, %s194
      %s196 = smul.addr %s195, 8
      %s197 = scalar_lea.vmem %s0, %s196
      %p198 = pneg %p50
      %p199 = pneg %p47
      %p200 = pneg %p71
      %p201 = pneg %p68
      %p202 = pneg %p92
      %p203 = pneg %p89
      %p204 = pneg %p113
      %p205 = pneg %p110
      %p206 = pneg %p141
      %p207 = pneg %p138
      %s208 = smul.u32 8, %s20
      %p209 = scmp.lt.s32.totalorder %s19, 1
      %s210 = scalar_select %p209, %s19, 1
      %p211 = scmp.lt.s32.totalorder %s208, 7
      %s212 = scalar_select %p211, %s208, 7
      %s213 = smul.addr %s210, 8
      %s214 = sadd.s32 %s212, %s213
      %s215 = smul.addr %s214, 8
      %s216 = scalar_lea.vmem %s4, %s215
      %s217 = smul.u32 16, %s20
      %p218 = scmp.lt.s32.totalorder %s19, 1
      %s219 = scalar_select %p218, %s19, 1
      %p220 = scmp.lt.s32.totalorder %s217, 15
      %s221 = scalar_select %p220, %s217, 15
      %s222 = smul.addr %s219, 16
      %s223 = sadd.s32 %s221, %s222
      %s224 = smul.addr %s223, 8
      %s225 = scalar_lea.vmem %s0, %s224
      %s226 = smul.u32 16, %s20
      %s227 = smul.u32 8, %s20
      %p228 = scmp.lt.s32.totalorder %s19, 1
      %s229 = scalar_select %p228, %s19, 1
      %p230 = scmp.lt.s32.totalorder %s227, 7
      %s231 = scalar_select %p230, %s227, 7
      %s232 = smul.addr %s229, 8
      %s233 = sadd.s32 %s231, %s232
      %s234 = smul.addr %s233, 8
      %s235 = scalar_lea.vmem %s4, %s234
      %s236 = smul.u32 8, %s20
      %v238 = vld [vmem:[%s225] sm:$0xff]
      %v239 = vld [vmem:[%s225 + $0x8] sm:$0xff]
      %v240 = vld [vmem:[%s225 + $0x10] sm:$0xff]
      %v241 = vld [vmem:[%s225 + $0x18] sm:$0xff]
      %v242 = vld [vmem:[%s225 + $0x20] sm:$0xff]
      %v243 = vld [vmem:[%s225 + $0x28] sm:$0xff]
      %v244 = vld [vmem:[%s225 + $0x30] sm:$0xff]
      %v245 = vld [vmem:[%s225 + $0x38] sm:$0xff]
      %v246 = vld [vmem:[%s225 + $0x40] sm:$0xff]
      %v247 = vld [vmem:[%s225 + $0x48] sm:$0xff]
      %v248 = vld [vmem:[%s225 + $0x50] sm:$0xff]
      %v249 = vld [vmem:[%s225 + $0x58] sm:$0xff]
      %v250 = vld [vmem:[%s225 + $0x60] sm:$0xff]
      %v251 = vld [vmem:[%s225 + $0x68] sm:$0xff]
      %v252 = vld [vmem:[%s225 + $0x70] sm:$0xff]
      %v253 = vld [vmem:[%s225 + $0x78] sm:$0xff]
      %v254 = vld [vmem:[%s1] sm:$0x1]
      %v256 = vlaneseq
      %v257 = vshrl.u32 %v256, 7
      %v258 = vsub.s32 0, %v257
      %v259 = vrot.slane %v254, %v258
      %v261 = vmul.f32 %v238, %v259
      %v262 = vmul.f32 %v239, %v259
      %v263 = vmul.f32 %v240, %v259
      %v264 = vmul.f32 %v241, %v259
      %v265 = vmul.f32 %v242, %v259
      %v266 = vmul.f32 %v243, %v259
      %v267 = vmul.f32 %v244, %v259
      %v268 = vmul.f32 %v245, %v259
      %v269 = vmul.f32 %v246, %v259
      %v270 = vmul.f32 %v247, %v259
      %v271 = vmul.f32 %v248, %v259
      %v272 = vmul.f32 %v249, %v259
      %v273 = vmul.f32 %v250, %v259
      %v274 = vmul.f32 %v251, %v259
      %v275 = vmul.f32 %v252, %v259
      %v276 = vmul.f32 %v253, %v259
      %v277 = vld [vmem:[%s2] sm:$0x1]
      %v279 = vlaneseq
      %v280 = vshrl.u32 %v279, 7
      %v281 = vsub.s32 0, %v280
      %v282 = vrot.slane %v277, %v281
      %v284 = vadd.f32 %v261, %v282
      %v285 = vadd.f32 %v262, %v282
      %v286 = vadd.f32 %v263, %v282
      %v287 = vadd.f32 %v264, %v282
      %v288 = vadd.f32 %v265, %v282
      %v289 = vadd.f32 %v266, %v282
      %v290 = vadd.f32 %v267, %v282
      %v291 = vadd.f32 %v268, %v282
      %v292 = vadd.f32 %v269, %v282
      %v293 = vadd.f32 %v270, %v282
      %v294 = vadd.f32 %v271, %v282
      %v295 = vadd.f32 %v272, %v282
      %v296 = vadd.f32 %v273, %v282
      %v297 = vadd.f32 %v274, %v282
      %v298 = vadd.f32 %v275, %v282
      %v299 = vadd.f32 %v276, %v282
      %v300 = vmax.f32 %v284, 0.0
      %v301 = vmax.f32 %v285, 0.0
      %v302 = vmax.f32 %v286, 0.0
      %v303 = vmax.f32 %v287, 0.0
      %v304 = vmax.f32 %v288, 0.0
      %v305 = vmax.f32 %v289, 0.0
      %v306 = vmax.f32 %v290, 0.0
      %v307 = vmax.f32 %v291, 0.0
      %v308 = vmax.f32 %v292, 0.0
      %v309 = vmax.f32 %v293, 0.0
      %v310 = vmax.f32 %v294, 0.0
      %v311 = vmax.f32 %v295, 0.0
      %v312 = vmax.f32 %v296, 0.0
      %v313 = vmax.f32 %v297, 0.0
      %v314 = vmax.f32 %v298, 0.0
      %v315 = vmax.f32 %v299, 0.0
      %332 = vrot.lane.b32.xlu0 %v300, 124
      %v333 = vpop.permute.xlu0 %332
      %334 = vrot.lane.b32.xlu0 %v301, 124
      %v335 = vpop.permute.xlu0 %334
      %336 = vrot.lane.b32.xlu0 %v302, 124
      %v337 = vpop.permute.xlu0 %336
      %338 = vrot.lane.b32.xlu0 %v303, 124
      %v339 = vpop.permute.xlu0 %338
      %340 = vrot.lane.b32.xlu0 %v304, 124
      %v341 = vpop.permute.xlu0 %340
      %342 = vrot.lane.b32.xlu0 %v305, 124
      %v343 = vpop.permute.xlu0 %342
      %344 = vrot.lane.b32.xlu0 %v306, 124
      %v345 = vpop.permute.xlu0 %344
      %346 = vrot.lane.b32.xlu0 %v307, 124
      %v347 = vpop.permute.xlu0 %346
      %348 = vrot.lane.b32.xlu0 %v308, 124
      %v349 = vpop.permute.xlu0 %348
      %350 = vrot.lane.b32.xlu0 %v309, 124
      %v351 = vpop.permute.xlu0 %350
      %352 = vrot.lane.b32.xlu0 %v310, 124
      %v353 = vpop.permute.xlu0 %352
      %354 = vrot.lane.b32.xlu0 %v311, 124
      %v355 = vpop.permute.xlu0 %354
      %356 = vrot.lane.b32.xlu0 %v312, 124
      %v357 = vpop.permute.xlu0 %356
      %358 = vrot.lane.b32.xlu0 %v313, 124
      %v359 = vpop.permute.xlu0 %358
      %360 = vrot.lane.b32.xlu0 %v314, 124
      %v361 = vpop.permute.xlu0 %360
      %362 = vrot.lane.b32.xlu0 %v315, 124
      %v363 = vpop.permute.xlu0 %362
      %v380 = vadd.f32 %v300, %v333
      %v381 = vadd.f32 %v301, %v335
      %v382 = vadd.f32 %v302, %v337
      %v383 = vadd.f32 %v303, %v339
      %v384 = vadd.f32 %v304, %v341
      %v385 = vadd.f32 %v305, %v343
      %v386 = vadd.f32 %v306, %v345
      %v387 = vadd.f32 %v307, %v347
      %v388 = vadd.f32 %v308, %v349
      %v389 = vadd.f32 %v309, %v351
      %v390 = vadd.f32 %v310, %v353
      %v391 = vadd.f32 %v311, %v355
      %v392 = vadd.f32 %v312, %v357
      %v393 = vadd.f32 %v313, %v359
      %v394 = vadd.f32 %v314, %v361
      %v395 = vadd.f32 %v315, %v363
      %v396 = vadd.f32 %v380, %v381
      %v397 = vadd.f32 %v382, %v383
      %v398 = vadd.f32 %v384, %v385
      %v399 = vadd.f32 %v386, %v387
      %v400 = vadd.f32 %v388, %v389
      %v401 = vadd.f32 %v390, %v391
      %v402 = vadd.f32 %v392, %v393
      %v403 = vadd.f32 %v394, %v395
      %v404 = vpack.c.bf16 %v397, %v396
      %v405 = vpack.c.bf16 %v399, %v398
      %v406 = vpack.c.bf16 %v401, %v400
      %v407 = vpack.c.bf16 %v403, %v402
      %v408 = vld [vmem:[%s3] sm:$0x3]
      %vm409 = vcmask 31744
      %v411 = vsel %vm409, %v404, 0
      %v414 = vsel %vm409, %v405, 0
      %v417 = vsel %vm409, %v406, 0
      %v420 = vsel %vm409, %v407, 0
      %vm422 = vcmask 1041408
      %v424 = vsel %vm422, %v408, 0
      %426 = vmatprep.subr.bf16.mxu0 0
      %427 = vmatpush1.bf16.msra.mxu0 %v424
      %428 = vmatprep.subr.bf16.mxu0 0
      %429 = vmatpush1.bf16.msra.mxu0 0
      %430 = vmatprep.subr.bf16.mxu0 0
      %431 = vmatpush1.bf16.msra.mxu0 0
      %432 = vmatprep.subr.bf16.mxu0 0
      %433 = vmatpush1.bf16.msra.mxu0 0
      %434 = vmatprep.subr.bf16.mxu0 0
      %435 = vmatpush1.bf16.msra.mxu0 0
      %436 = vmatprep.subr.bf16.mxu0 0
      %437 = vmatpush1.bf16.msra.mxu0 0
      %438 = vmatprep.subr.bf16.mxu0 0
      %439 = vmatpush1.bf16.msra.mxu0 0
      %440 = vmatprep.subr.bf16.mxu0 0
      %441 = vmatpush1.bf16.msra.mxu0 0
      %442 = vmatprep.subr.bf16.mxu0 0
      %443 = vmatpush1.bf16.msra.mxu0 0
      %444 = vmatprep.subr.bf16.mxu0 0
      %445 = vmatpush1.bf16.msra.mxu0 0
      %446 = vmatprep.subr.bf16.mxu0 0
      %447 = vmatpush1.bf16.msra.mxu0 0
      %448 = vmatprep.subr.bf16.mxu0 0
      %449 = vmatpush1.bf16.msra.mxu0 0
      %450 = vmatprep.subr.bf16.mxu0 0
      %451 = vmatpush1.bf16.msra.mxu0 0
      %452 = vmatprep.subr.bf16.mxu0 0
      %453 = vmatpush1.bf16.msra.mxu0 0
      %454 = vmatprep.subr.bf16.mxu0 0
      %455 = vmatpush1.bf16.msra.mxu0 0
      %456 = vmatprep.subr.bf16.mxu0 0
      %457 = vmatpush1.bf16.msra.mxu0 0
      %458 = vmatprep.mubr.bf16.mxu0 0
      %459 = vmatmul.mubr.bf16.gmra.mrb[0].mxu0 %v411
      %v460 = vpop.f32.mrb[0].mxu0
      %v461 = vadd.f32 0.0, %v460
      %v462 = vpop.f32.mrb[0].mxu0
      %v463 = vpop.f32.mrb[0].mxu0
      %v464 = vadd.f32 0.0, %v463
      %v465 = vpop.f32.mrb[0].mxu0
      %466 = vmatprep.mubr.bf16.mxu0 0
      %467 = vmatmul.mubr.bf16.gmra.mrb[0].mxu0 %v414
      %v468 = vpop.f32.mrb[0].mxu0
      %v469 = vadd.f32 0.0, %v468
      %v470 = vpop.f32.mrb[0].mxu0
      %v471 = vpop.f32.mrb[0].mxu0
      %v472 = vadd.f32 0.0, %v471
      %v473 = vpop.f32.mrb[0].mxu0
      %474 = vmatprep.mubr.bf16.mxu0 0
      %475 = vmatmul.mubr.bf16.gmra.mrb[0].mxu0 %v417
      %v476 = vpop.f32.mrb[0].mxu0
      %v477 = vadd.f32 0.0, %v476
      %v478 = vpop.f32.mrb[0].mxu0
      %v479 = vpop.f32.mrb[0].mxu0
      %v480 = vadd.f32 0.0, %v479
      %v481 = vpop.f32.mrb[0].mxu0
      %482 = vmatprep.mubr.bf16.mxu0 0
      %483 = vmatmul.mubr.bf16.gmra.mrb[0].mxu0 %v420
      %v484 = vpop.f32.mrb[0].mxu0
      %v485 = vadd.f32 0.0, %v484
      %v486 = vpop.f32.mrb[0].mxu0
      %v487 = vpop.f32.mrb[0].mxu0
      %v488 = vadd.f32 0.0, %v487
      %v489 = vpop.f32.mrb[0].mxu0
      %490 = vdwg.mxu0
      %vm491 = vcmask 64512
      %492 = vst.msk [vmem:[%s235] sm:$0xff] %vm491, %v461
      %493 = vst.msk [vmem:[%s235 + $0x8] sm:$0xff] %vm491, %v464
      %494 = vst.msk [vmem:[%s235 + $0x10] sm:$0xff] %vm491, %v469
      %495 = vst.msk [vmem:[%s235 + $0x18] sm:$0xff] %vm491, %v472
      %496 = vst.msk [vmem:[%s235 + $0x20] sm:$0xff] %vm491, %v477
      %497 = vst.msk [vmem:[%s235 + $0x28] sm:$0xff] %vm491, %v480
      %498 = vst.msk [vmem:[%s235 + $0x30] sm:$0xff] %vm491, %v485
      %499 = vst.msk [vmem:[%s235 + $0x38] sm:$0xff] %vm491, %v488
      %s500 = smul.u32 8, %s20
      %p501 = scmp.lt.s32.totalorder %s19, 1
      %s502 = scalar_select %p501, %s19, 1
      %p503 = scmp.lt.s32.totalorder %s500, 7
      %s504 = scalar_select %p503, %s500, 7
      %s505 = smul.addr %s502, 8
      %s506 = sadd.s32 %s504, %s505
      %s507 = smul.addr %s506, 8
      %s508 = scalar_lea.vmem %s4, %s507
      // Predicated region
      $region37: #{tpu_custom_call.1} parent=35 // pred_check
        %p509 = pneg %p138
      $region38: #{tpu_custom_call.1} parent=35 // pred_check_branch
        %511 = sbr.rel (%p509) target = $region40
      $region39: #{tpu_custom_call.1} parent=35 // pred_region
        %s512 = smul.u32 8, %s20
      $region40: #{tpu_custom_call.1} parent=35 // pred_fallthru
        _
    $region36: #{tpu_custom_call.1} parent=5 // pred_fallthru
      _
    %p513 = scmp.le.s32.totalorder 2, %s10
    // Predicated region
    $region41: #{tpu_custom_call.1} parent=5 // pred_check
      %p514 = pneg %p513
    $region42: #{tpu_custom_call.1} parent=5 // pred_check_branch
      %516 = sbr.rel (%p514) target = $region44
    $region43: #{tpu_custom_call.1} parent=5 // pred_region
      %s517 = ssub.s32 %s10, 2
      // Predicated region
      $region45: #{tpu_custom_call.1} parent=43 // pred_check
        %p518 = pneg %p144
      $region46: #{tpu_custom_call.1} parent=43 // pred_check_branch
        %520 = sbr.rel (%p518) target = $region48
      $region47: #{tpu_custom_call.1} parent=43 // pred_region
        %s521 = smul.u32 8, %s22
        %p522 = scmp.lt.s32.totalorder %s21, 1
        %s523 = scalar_select %p522, %s21, 1
        %p524 = scmp.lt.s32.totalorder %s521, 7
        %s525 = scalar_select %p524, %s521, 7
        %s526 = smul.addr %s523, 8
        %s527 = sadd.s32 %s525, %s526
        %s528 = smul.addr %s527, 8
        %s529 = scalar_lea.vmem %s4, %s528
      $region48: #{tpu_custom_call.1} parent=43 // pred_fallthru
        _
    $region44: #{tpu_custom_call.1} parent=5 // pred_fallthru
      _
  $region6: #{tpu_custom_call.1} parent=0 // loop_footer
    %s14 = sadd.s32 1, %s10
  $region7: #{tpu_custom_call.1} parent=0 // loop_footer_branch
    %9 = sbr.rel target = $region3
  $region8: #{tpu_custom_call.1} parent=0 // loop_exit
    _

</llo_original>
